<compile_context>
chip_gen: v6e
topology: v6e:2x2x1
jax: 0.10.0
libtpu: 0.0.40
codegen_flags: <defaults>
</compile_context>

<pallas_src>
import numpy as np
import jax
import jax.numpy as jnp
from jax.experimental import pallas as pl
from jax.experimental.pallas import tpu as pltpu

_SUB = 8               # native sublane count
_LANE = 128            # native lane count
_MAX_TILE_ROWS = 4096  # (4096, 128) f32 block = 2 MiB; 2 inputs x 2 buffers = 8 MiB VMEM
_NCORES = 2            # shard the reduction across 2 TensorCores on v7x


def _make_kernel(total_rows):
    """Kernel closure over the true (unpadded) number of 128-lane rows."""

    def kernel(o_ref, t_ref, sum_ref, cnt_ref):
        c = pl.program_id(0)
        i = pl.program_id(1)

        @pl.when(i == 0)
        def _():
            sum_ref[...] = jnp.zeros_like(sum_ref)
            cnt_ref[...] = jnp.zeros_like(cnt_ref)

        # Stream in native dtype; cast per tile on the VPU.
        x = o_ref[...].astype(jnp.float32)
        t = t_ref[...].astype(jnp.float32)

        tile_rows = x.shape[0]
        # Logical (unclamped) step index -> global row index of every element;
        # rows beyond `total_rows` (partial / clamped-duplicate blocks) are
        # masked out, so whatever garbage the DMA padded is irrelevant.
        step = c * pl.num_programs(1) + i
        row_ids = jax.lax.broadcasted_iota(jnp.int32, x.shape, 0)
        in_bounds = (step * tile_rows + row_ids) < total_rows

        valid = jnp.logical_and(in_bounds, jnp.logical_not(jnp.isnan(t)))
        # Select AFTER the subtract: NaN/Inf in x or t at masked positions
        # contributes exactly 0 (matches PyTorch's masked_select semantics).
        diff = jnp.where(valid, x - t, 0.0)
        sq = diff * diff
        ones = jnp.where(valid, 1.0, 0.0)

        # (tile_rows, 128) -> (tile_rows//8, 8, 128): minor dims match the
        # native (8, 128) vreg tile, so this is layout-preserving and the
        # axis-0 sums are plain whole-vreg VPU adds. The cross-lane reduce
        # happens once, outside the kernel, on the tiny (8, ncores*128) outputs.
        # (f32 per-lane counts are exact up to 2^24 per lane ~ 1.7e10 elements.)
        sum_ref[...] += jnp.sum(sq.reshape(tile_rows // _SUB, _SUB, _LANE), axis=0)
        cnt_ref[...] += jnp.sum(ones.reshape(tile_rows // _SUB, _SUB, _LANE), axis=0)

    return kernel


def nan_mse_loss(output, target, size_average=True):
    """Masked MSE loss; NaN entries in `target` are excluded from the loss."""
    o = output.reshape(-1)
    t = target.reshape(-1)
    n = o.shape[0]

    # Lane-dense (rows, 128) view.  Zero-copy when n is a multiple of 128 and
    # the input has at least one (8, 128) tile; otherwise pad the tiny tail
    # (outputs with 0, targets with NaN so they are masked out).
    n_aligned = max(int(pl.cdiv(n, _LANE)) * _LANE, _SUB * _LANE)
    pad = n_aligned - n
    if pad > 0:
        o = jnp.pad(o, (0, pad))
        t = jnp.pad(t, (0, pad), constant_values=jnp.nan)
    rows = n_aligned // _LANE
    o2 = o.reshape(rows, _LANE)
    t2 = t.reshape(rows, _LANE)

    # Largest useful tile (multiple of 8 rows, never larger than the array).
    tile_rows = min(_MAX_TILE_ROWS, (rows // _SUB) * _SUB)
    num_blocks = int(pl.cdiv(rows, tile_rows))
    ncores = _NCORES if num_blocks >= _NCORES else 1
    steps_per_core = int(pl.cdiv(num_blocks, ncores))

    def in_map(c, i):
        # Clamp so an overflow step (num_blocks % ncores != 0) re-reads a valid
        # block; the kernel masks it out via the global row index.
        return (jnp.minimum(c * steps_per_core + i, num_blocks - 1), 0)

    loss_sum, valid_cnt = pl.pallas_call(
        _make_kernel(rows),
        out_shape=(
            jax.ShapeDtypeStruct((_SUB, ncores * _LANE), jnp.float32),
            jax.ShapeDtypeStruct((_SUB, ncores * _LANE), jnp.float32),
        ),
        grid_spec=pltpu.PrefetchScalarGridSpec(
            num_scalar_prefetch=0,
            grid=(ncores, steps_per_core),
            in_specs=[
                pl.BlockSpec((tile_rows, _LANE), in_map),
                pl.BlockSpec((tile_rows, _LANE), in_map),
            ],
            out_specs=(
                # Output block index ignores the step axis -> resident
                # accumulator; one (8, 128) column block per core.
                pl.BlockSpec((_SUB, _LANE), lambda c, i: (0, c)),
                pl.BlockSpec((_SUB, _LANE), lambda c, i: (0, c)),
            ),
        ),
        compiler_params=pltpu.CompilerParams(
            dimension_semantics=("parallel", "arbitrary"),
        ),
    )(o2, t2)

    s = jnp.sum(loss_sum)
    c = jnp.sum(valid_cnt)
    if size_average:
        return s / c   # mean over valid elements; NaN if all targets are NaN (0/0)
    return s           # sum reduction


def _reference(output, target, size_average=True):
    o = output.reshape(-1).astype(jnp.float32)
    t = target.reshape(-1).astype(jnp.float32)
    valid = jnp.logical_not(jnp.isnan(t))
    ts = jnp.where(valid, t, 0.0)
    os = jnp.where(valid, o, 0.0)
    se = (os - ts) * (os - ts)
    if size_average:
        return jnp.sum(se) / jnp.sum(valid.astype(jnp.float32))
    return jnp.sum(se)


def _check_case(key, shape, nan_p):
    k1, k2, k3 = jax.random.split(key, 3)
    out = jax.random.uniform(k1, shape, dtype=jnp.float32)
    tgt = jax.random.uniform(k2, shape, dtype=jnp.float32)
    m = jax.random.bernoulli(k3, nan_p, shape)
    tgt = jnp.where(m, jnp.nan, tgt)
    loss = jax.block_until_ready(nan_mse_loss(out, tgt, size_average=True))
    ref = jax.block_until_ready(_reference(out, tgt, size_average=True))
    assert np.isfinite(float(loss)), (shape, loss)
    assert np.allclose(float(loss), float(ref), rtol=1e-5, atol=1e-6), (shape, loss, ref)


if __name__ == "__main__":
    key = jax.random.PRNGKey(0)
    keys = jax.random.split(key, 3)

    # Case 1: module-like small shape (B, D) = (8, 32); NaNs also injected into
    # the OUTPUT at masked positions (must not poison the loss).
    k1, k2, k3 = jax.random.split(keys[0], 3)
    B, D = 8, 32
    output = jax.random.uniform(k1, (B, D), dtype=jnp.float32)   # values in [0, 1]
    target = jax.random.uniform(k2, (B, D), dtype=jnp.float32)
    nan_mask = jax.random.bernoulli(k3, 0.2, (B, D))
    target = jnp.where(nan_mask, jnp.nan, target)
    output = jnp.where(nan_mask, jnp.nan, output)
    loss = jax.block_until_ready(nan_mse_loss(output, target, size_average=True))
    ref = jax.block_until_ready(_reference(output, target, size_average=True))
    assert np.isfinite(float(loss))
    assert np.allclose(float(loss), float(ref), rtol=1e-5, atol=1e-6), (loss, ref)

    # Case 2: lane-aligned length (zero-copy path), partial last block, 2-core grid.
    _check_case(keys[1], (64, 200), 0.3)
    # Case 3: lane-unaligned length (tiny tail-pad path), partial block, 2-core grid.
    _check_case(keys[2], (33, 70), 0.1)

    print("KERNEL_OK")
</pallas_src>

<mosaic_0001>
module attributes {stable_mosaic.version = 11 : i64} {
  func.func @kernel(%arg0: i32, %arg1: i32, %arg2: memref<8x128xf32, #tpu.memory_space<vmem>>, %arg3: memref<8x128xf32, #tpu.memory_space<vmem>>, %arg4: memref<8x128xf32, #tpu.memory_space<vmem>>, %arg5: memref<8x128xf32, #tpu.memory_space<vmem>>) attributes {dimension_semantics = [#tpu.dimension_semantics<parallel>, #tpu.dimension_semantics<arbitrary>], iteration_bounds = array<i64: 1, 1>, scalar_prefetch = 0 : i64, scratch_operands = 0 : i64, tpu.core_type = #tpu.core_type<tc>, window_params = [{transform_indices = @transform_0, window_bounds = array<i64: 8, 128>}, {transform_indices = @transform_1, window_bounds = array<i64: 8, 128>}, {transform_indices = @transform_2, window_bounds = array<i64: 8, 128>}, {transform_indices = @transform_3, window_bounds = array<i64: 8, 128>}]} {
    %c0_i32 = arith.constant 0 : i32
    %0 = arith.cmpi eq, %arg1, %c0_i32 : i32
    %1 = arith.extui %0 : i1 to i32
    %c0_i32_0 = arith.constant 0 : i32
    %2 = arith.cmpi ne, %1, %c0_i32_0 : i32
    scf.if %2 {
      %cst_18 = arith.constant 0.000000e+00 : f32
      %33 = vector.broadcast %cst_18 : f32 to vector<8x128xf32>
      %c0_19 = arith.constant 0 : index
      %c0_20 = arith.constant 0 : index
      %34 = vector.load %arg4[%c0_19, %c0_20] : memref<8x128xf32, #tpu.memory_space<vmem>>, vector<8x128xf32>
      tpu.vector_store %arg4[%c0_19, %c0_20], %33 {strides = array<i32>} : memref<8x128xf32, #tpu.memory_space<vmem>>, vector<8x128xf32>,
      %cst_21 = arith.constant 0.000000e+00 : f32
      %35 = vector.broadcast %cst_21 : f32 to vector<8x128xf32>
      %c0_22 = arith.constant 0 : index
      %c0_23 = arith.constant 0 : index
      %36 = vector.load %arg5[%c0_22, %c0_23] : memref<8x128xf32, #tpu.memory_space<vmem>>, vector<8x128xf32>
      tpu.vector_store %arg5[%c0_22, %c0_23], %35 {strides = array<i32>} : memref<8x128xf32, #tpu.memory_space<vmem>>, vector<8x128xf32>,
    } else {
    }
    %c0 = arith.constant 0 : index
    %c0_1 = arith.constant 0 : index
    %3 = vector.load %arg2[%c0, %c0_1] : memref<8x128xf32, #tpu.memory_space<vmem>>, vector<8x128xf32>
    %c0_2 = arith.constant 0 : index
    %c0_3 = arith.constant 0 : index
    %4 = vector.load %arg3[%c0_2, %c0_3] : memref<8x128xf32, #tpu.memory_space<vmem>>, vector<8x128xf32>
    %c1_i32 = arith.constant 1 : i32
    %5 = arith.muli %arg0, %c1_i32 : i32
    %6 = arith.addi %5, %arg1 : i32
    %7 = tpu.iota {dimensions = array<i32: 0>} : vector<8x128xi32>
    %c8_i32 = arith.constant 8 : i32
    %8 = arith.muli %6, %c8_i32 : i32
    %9 = vector.broadcast %8 : i32 to vector<8x128xi32>
    %10 = arith.addi %9, %7 : vector<8x128xi32>
    %c8_i32_4 = arith.constant 8 : i32
    %11 = vector.broadcast %c8_i32_4 : i32 to vector<8x128xi32>
    %12 = arith.cmpi slt, %10, %11 : vector<8x128xi32>
    %13 = arith.cmpf one, %4, %4 : vector<8x128xf32>
    %cst = arith.constant dense<true> : vector<8x128xi1>
    %14 = arith.xori %13, %cst : vector<8x128xi1>
    %15 = arith.andi %12, %14 : vector<8x128xi1>
    %16 = arith.subf %3, %4 : vector<8x128xf32>
    %cst_5 = arith.constant 0.000000e+00 : f32
    %17 = vector.broadcast %cst_5 : f32 to vector<8x128xf32>
    %18 = arith.select %15, %16, %17 : vector<8x128xi1>, vector<8x128xf32>
    %19 = arith.mulf %18, %18 : vector<8x128xf32>
    %cst_6 = arith.constant 1.000000e+00 : f32
    %cst_7 = arith.constant 0.000000e+00 : f32
    %20 = vector.broadcast %cst_6 : f32 to vector<8x128xf32>
    %21 = vector.broadcast %cst_7 : f32 to vector<8x128xf32>
    %22 = arith.select %15, %20, %21 : vector<8x128xi1>, vector<8x128xf32>
    %c0_8 = arith.constant 0 : index
    %c0_9 = arith.constant 0 : index
    %23 = vector.load %arg4[%c0_8, %c0_9] : memref<8x128xf32, #tpu.memory_space<vmem>>, vector<8x128xf32>
    %24 = vector.shape_cast %19 : vector<8x128xf32> to vector<1x8x128xf32>
    %cst_10 = arith.constant dense<0.000000e+00> : vector<8x128xf32>
    %25 = vector.multi_reduction <add>, %24, %cst_10 [0] : vector<1x8x128xf32> to vector<8x128xf32>
    %26 = arith.addf %23, %25 : vector<8x128xf32>
    %c0_11 = arith.constant 0 : index
    %c0_12 = arith.constant 0 : index
    %27 = vector.load %arg4[%c0_11, %c0_12] : memref<8x128xf32, #tpu.memory_space<vmem>>, vector<8x128xf32>
    tpu.vector_store %arg4[%c0_11, %c0_12], %26 {strides = array<i32>} : memref<8x128xf32, #tpu.memory_space<vmem>>, vector<8x128xf32>,
    %c0_13 = arith.constant 0 : index
    %c0_14 = arith.constant 0 : index
    %28 = vector.load %arg5[%c0_13, %c0_14] : memref<8x128xf32, #tpu.memory_space<vmem>>, vector<8x128xf32>
    %29 = vector.shape_cast %22 : vector<8x128xf32> to vector<1x8x128xf32>
    %cst_15 = arith.constant dense<0.000000e+00> : vector<8x128xf32>
    %30 = vector.multi_reduction <add>, %29, %cst_15 [0] : vector<1x8x128xf32> to vector<8x128xf32>
    %31 = arith.addf %28, %30 : vector<8x128xf32>
    %c0_16 = arith.constant 0 : index
    %c0_17 = arith.constant 0 : index
    %32 = vector.load %arg5[%c0_16, %c0_17] : memref<8x128xf32, #tpu.memory_space<vmem>>, vector<8x128xf32>
    tpu.vector_store %arg5[%c0_16, %c0_17], %31 {strides = array<i32>} : memref<8x128xf32, #tpu.memory_space<vmem>>, vector<8x128xf32>,
    return
  }
  func.func @transform_0(%arg0: i32, %arg1: i32) -> (i32, i32) {
    %c1_i32 = arith.constant 1 : i32
    %0 = arith.muli %arg0, %c1_i32 : i32
    %1 = arith.addi %0, %arg1 : i32
    %c0_i32 = arith.constant 0 : i32
    %2 = arith.minsi %1, %c0_i32 : i32
    %c0_i32_0 = arith.constant 0 : i32
    %c0_i32_1 = arith.constant 0 : i32
    return %2, %c0_i32_0 : i32, i32
  }
  func.func @transform_1(%arg0: i32, %arg1: i32) -> (i32, i32) {
    %c1_i32 = arith.constant 1 : i32
    %0 = arith.muli %arg0, %c1_i32 : i32
    %1 = arith.addi %0, %arg1 : i32
    %c0_i32 = arith.constant 0 : i32
    %2 = arith.minsi %1, %c0_i32 : i32
    %c0_i32_0 = arith.constant 0 : i32
    %c0_i32_1 = arith.constant 0 : i32
    return %2, %c0_i32_0 : i32, i32
  }
  func.func @transform_2(%arg0: i32, %arg1: i32) -> (i32, i32) {
    %c0_i32 = arith.constant 0 : i32
    %c0_i32_0 = arith.constant 0 : i32
    return %c0_i32, %arg0 : i32, i32
  }
  func.func @transform_3(%arg0: i32, %arg1: i32) -> (i32, i32) {
    %c0_i32 = arith.constant 0 : i32
    %c0_i32_0 = arith.constant 0 : i32
    return %c0_i32, %arg0 : i32, i32
  }
}

</mosaic_0001>

<llo_original>
// kernel: tpu_custom_call.1
$region0: #{tpu_custom_call.1}
  #allocation0 [shape = 'u32[]', space=smem, size = 0x4, offset = 0x4, fixed_abs, tag = 'smem constant byte address 0x4 - core index']
  #allocation1 [shape = 'u32[144,128]{1,0:T(1,128)}', space=vmem, size = 0x12000, scoped, tag = 'internal scratch']
  %s0 = inlined_call_operand.hbm [shape: f32[8,128], index: 0, kind: input, shape index: {}]
  %s1 = inlined_call_operand.hbm [shape: f32[8,128], index: 1, kind: input, shape index: {}]
  %s2 = inlined_call_operand.hbm [shape: f32[8,128], index: 2, kind: output, shape index: {0}]
  %s3 = inlined_call_operand.hbm [shape: f32[8,128], index: 3, kind: output, shape index: {1}]
  %4 = xla_tuple %s2, %s3
  %s5 = sld [smem:[#allocation0]]
  $region38: #{tpu_custom_call.1} parent=0
    _
  %s7 = ssub.s32 1, %s5
  %s8 = scalar_select 0, %s7, %s5
  $region1: #{tpu_custom_call.1} parent=0
    #allocation2 [shape = 'u8[4096]{0}', space=vmem, size = 0x1000, scoped, tag = 'input window, operand 0, single buffered']
    #allocation3 [shape = 's32[1]{0}', space=sflag, size = 0x4, scoped, tag = 'scoped memory for tpu_custom_call.1']
    #allocation4 [shape = 's32[1]{0}', space=sflag, size = 0x4, scoped, tag = 'scoped memory for tpu_custom_call.1']
    #allocation5 [shape = 'u8[4096]{0}', space=vmem, size = 0x1000, scoped, tag = 'input window, operand 1, single buffered']
    #allocation6 [shape = 's32[1]{0}', space=sflag, size = 0x4, scoped, tag = 'scoped memory for tpu_custom_call.1']
    #allocation7 [shape = 'u8[4096]{0}', space=vmem, size = 0x1000, scoped, tag = 'output window, operand 0, single buffered']
    #allocation8 [shape = 'u8[4096]{0}', space=vmem, size = 0x1000, scoped, tag = 'output window, operand 1, single buffered']
    #allocation9 [shape = 's32[1]{0}', space=sflag, size = 0x4, scoped, tag = 'scoped memory for tpu_custom_call.1']
    %9 = vsyncpa [#allocation3], 0
    %10 = vsyncpa [#allocation6], 0
    %11 = vsyncpa [#allocation4], 0
    %12 = vsyncpa [#allocation9], 0
    // Predicated region
    $region2: #{tpu_custom_call.1} parent=1 // pred_check
      _
    $region3: #{tpu_custom_call.1} parent=1 // pred_check_branch
      %14 = sbr.rel (0) target = $region5
    $region4: #{tpu_custom_call.1} parent=1 // pred_region
      %s15 = sadd.s32 0, 0
      %p16 = scmp.lt.s32.totalorder %s15, 0
      %s17 = scalar_select %p16, %s15, 0
      %s19 = ssub.s32 128, 128
      %20 = vsyncadd [#allocation3], %s19
      %s21 = smul.addr %s17, 128
      %s22 = scalar_lea.hbm %s0, %s21
      %s24 = sshll.u32 [#allocation2], 4
      %s25 = int_to_ptr.vmem [resolvable:$true] %s24
      %27 = dma.hbm_to_vmem [thread:$0]  %s22, 128, %s25, [#allocation3]
    $region5: #{tpu_custom_call.1} parent=1 // pred_fallthru
      _
    // Predicated region
    $region6: #{tpu_custom_call.1} parent=1 // pred_check
      _
    $region7: #{tpu_custom_call.1} parent=1 // pred_check_branch
      %29 = sbr.rel (0) target = $region9
    $region8: #{tpu_custom_call.1} parent=1 // pred_region
      %s30 = sadd.s32 0, 0
      %p31 = scmp.lt.s32.totalorder %s30, 0
      %s32 = scalar_select %p31, %s30, 0
      %s34 = ssub.s32 128, 128
      %35 = vsyncadd [#allocation6], %s34
      %s36 = smul.addr %s32, 128
      %s37 = scalar_lea.hbm %s1, %s36
      %s39 = sshll.u32 [#allocation5], 4
      %s40 = int_to_ptr.vmem [resolvable:$true] %s39
      %42 = dma.hbm_to_vmem [thread:$0]  %s37, 128, %s40, [#allocation6]
    $region9: #{tpu_custom_call.1} parent=1 // pred_fallthru
      _
    // Predicated region
    $region10: #{tpu_custom_call.1} parent=1 // pred_check
      _
    $region11: #{tpu_custom_call.1} parent=1 // pred_check_branch
      %44 = sbr.rel (0) target = $region13
    $region12: #{tpu_custom_call.1} parent=1 // pred_region
      %45 = dma.done [#allocation3], 128
    $region13: #{tpu_custom_call.1} parent=1 // pred_fallthru
      _
    // Predicated region
    $region14: #{tpu_custom_call.1} parent=1 // pred_check
      _
    $region15: #{tpu_custom_call.1} parent=1 // pred_check_branch
      %47 = sbr.rel (0) target = $region17
    $region16: #{tpu_custom_call.1} parent=1 // pred_region
      %48 = dma.done [#allocation6], 128
    $region17: #{tpu_custom_call.1} parent=1 // pred_fallthru
      _
    %s49 = sadd.s32 0, 0
    %p50 = scmp.lt.s32.totalorder %s49, 0
    %s51 = scalar_select %p50, %s49, 0
    %s52 = sadd.s32 0, 0
    %p53 = scmp.lt.s32.totalorder %s52, 0
    %s54 = scalar_select %p53, %s52, 0
    %p55 = scmp.eq.s32.totalorder 0, 0
    // Predicated region
    $region18: #{tpu_custom_call.1} parent=1 // pred_check
      %p56 = pneg %p55
    $region19: #{tpu_custom_call.1} parent=1 // pred_check_branch
      %58 = sbr.rel (%p56) target = $region21
    $region20: #{tpu_custom_call.1} parent=1 // pred_region
      %59 = vst [vmem:[#allocation7] sm:$0xff] 0.0
      %60 = vst [vmem:[#allocation8] sm:$0xff] 0.0
    $region21: #{tpu_custom_call.1} parent=1 // pred_fallthru
      _
    %v61 = vld [vmem:[#allocation2] sm:$0xff]
    %v62 = vld [vmem:[#allocation5] sm:$0xff]
    %s63 = sadd.s32 0, 0
    %v64 = vlaneseq
    %v65 = vshrl.u32 %v64, 7
    %s66 = smul.u32 %s63, 8
    %v67 = vstv %s66
    %v68 = vadd.s32 %v67, %v65
    %vm69 = vcmp.lt.s32.totalorder %v68, 8
    %vm70 = vcmp.ne.f32.partialorder %v62, %v62
    %vm71 = vmxor %vm70, 1
    %vm72 = vmand %vm69, %vm71
    %v73 = vsub.f32 %v61, %v62
    %v74 = vsel %vm72, %v73, 0.0
    %v75 = vmul.f32 %v74, %v74
    %v76 = vsel %vm72, 1.0, 0.0
    %v77 = vld [vmem:[#allocation7] sm:$0xff]
    %v78 = vadd.f32 %v75, 0.0
    %v79 = vadd.f32 %v77, %v78
    %80 = vst [vmem:[#allocation7] sm:$0xff] %v79
    %v81 = vld [vmem:[#allocation8] sm:$0xff]
    %v82 = vadd.f32 %v76, 0.0
    %v83 = vadd.f32 %v81, %v82
    %84 = vst [vmem:[#allocation8] sm:$0xff] %v83
    // Predicated region
    $region22: #{tpu_custom_call.1} parent=1 // pred_check
      _
    $region23: #{tpu_custom_call.1} parent=1 // pred_check_branch
      %86 = sbr.rel (0) target = $region25
    $region24: #{tpu_custom_call.1} parent=1 // pred_region
      %s88 = ssub.s32 128, 128
      %89 = vsyncadd [#allocation4], %s88
      %s91 = sshll.u32 [#allocation7], 4
      %s92 = int_to_ptr.vmem [resolvable:$true] %s91
      %94 = dma.vmem_to_hbm [thread:$0]  %s92, 128, %s2, [#allocation4]
    $region25: #{tpu_custom_call.1} parent=1 // pred_fallthru
      _
    // Predicated region
    $region26: #{tpu_custom_call.1} parent=1 // pred_check
      _
    $region27: #{tpu_custom_call.1} parent=1 // pred_check_branch
      %96 = sbr.rel (0) target = $region29
    $region28: #{tpu_custom_call.1} parent=1 // pred_region
      %s98 = ssub.s32 128, 128
      %99 = vsyncadd [#allocation9], %s98
      %s101 = sshll.u32 [#allocation8], 4
      %s102 = int_to_ptr.vmem [resolvable:$true] %s101
      %104 = dma.vmem_to_hbm [thread:$0]  %s102, 128, %s3, [#allocation9]
    $region29: #{tpu_custom_call.1} parent=1 // pred_fallthru
      _
    // Predicated region
    $region30: #{tpu_custom_call.1} parent=1 // pred_check
      _
    $region31: #{tpu_custom_call.1} parent=1 // pred_check_branch
      %106 = sbr.rel (0) target = $region33
    $region32: #{tpu_custom_call.1} parent=1 // pred_region
      %107 = dma.done [#allocation4], 128
    $region33: #{tpu_custom_call.1} parent=1 // pred_fallthru
      _
    // Predicated region
    $region34: #{tpu_custom_call.1} parent=1 // pred_check
      _
    $region35: #{tpu_custom_call.1} parent=1 // pred_check_branch
      %109 = sbr.rel (0) target = $region37
    $region36: #{tpu_custom_call.1} parent=1 // pred_region
      %110 = dma.done [#allocation9], 128
    $region37: #{tpu_custom_call.1} parent=1 // pred_fallthru
      _
    %111 = vsyncpa [#allocation3], 1
    %112 = vsyncpa [#allocation6], 1
    %113 = vsyncpa [#allocation4], 1
    %114 = vsyncpa [#allocation9], 1

</llo_original>
